<compile_context>
chip_gen: v7x
topology: tpu7x:2x2x1
jax: 0.10.0
libtpu: 0.0.40
codegen_flags: <defaults>
</compile_context>

<pallas_src>
import jax
import jax.numpy as jnp
import numpy as np
from jax.experimental import pallas as pl
from jax.experimental.pallas import tpu as pltpu


# ----------------------------------------------------------------------------
# Kernel: one MXU matmul + single-pass BN + LeakyReLU on a lane-dense slab.
# ----------------------------------------------------------------------------
def _make_kernel(M, eps, negative_slope, use_relu):
    inv_m = 1.0 / float(M)

    def kernel(w_ref, x_ref, gamma_ref, beta_ref, o_ref):
        # ---- convolution as a single im2col matmul (bias=False) ------------
        # w_ref: (Cout, KH*KW*Cin), x_ref: (KH*KW*Cin, M)  ->  conv: (Cout, M)
        conv = jnp.dot(w_ref[...], x_ref[...],
                       preferred_element_type=jnp.float32)

        # ---- BatchNorm2d forward (training mode: biased batch stats) -------
        # Per-channel stats are per-row here; axis=-1 is a lane reduction.
        s = jnp.sum(conv, axis=-1, keepdims=True)            # (Cout, 1)
        ss = jnp.sum(conv * conv, axis=-1, keepdims=True)    # (Cout, 1)
        mean = s * inv_m
        var = ss * inv_m - mean * mean                       # biased variance
        inv_std = jax.lax.rsqrt(var + eps)
        scale = gamma_ref[...] * inv_std                     # (Cout, 1)
        shift = beta_ref[...] - mean * scale                 # (Cout, 1)
        y = conv * scale + shift                             # single FMA pass
        # TODO(synk): running_mean/running_var momentum updates are a training
        # side effect and do not affect the forward output; not emitted here.

        # ---- LeakyReLU(0.1) -------------------------------------------------
        if use_relu:
            y = jnp.where(y >= 0, y, negative_slope * y)

        o_ref[...] = y.astype(o_ref.dtype)

    return kernel


# ----------------------------------------------------------------------------
# Wrapper: NCHW in / NCHW out, im2col slab built once on the XLA side.
# ----------------------------------------------------------------------------
def conv2d_norm_noli(x_nchw, weight_oihw, gamma, beta, *, stride=1,
                     same_padding=True, relu=True, eps=1e-5,
                     negative_slope=0.1):
    """JAX/Pallas equivalent of Conv2d_Norm_Noli.forward (NCHW in/out)."""
    N, Cin, H, W = x_nchw.shape
    Cout, Cin_w, KH, KW = weight_oihw.shape
    assert Cin == Cin_w
    pad_h = (KH - 1) // 2 if same_padding else 0
    pad_w = (KW - 1) // 2 if same_padding else 0
    OH = (H + 2 * pad_h - KH) // stride + 1
    OW = (W + 2 * pad_w - KW) // stride + 1
    M = N * OH * OW
    Kc = KH * KW * Cin

    # --- im2col slab (pad folded in); column index = n*OH*OW + oh*OW + ow ---
    x = jnp.transpose(x_nchw, (0, 2, 3, 1)).astype(jnp.float32)   # NHWC
    x = jnp.pad(x, ((0, 0), (pad_h, pad_h), (pad_w, pad_w), (0, 0)))
    cols = []
    for kh in range(KH):
        for kw in range(KW):
            cols.append(x[:, kh:kh + stride * (OH - 1) + 1:stride,
                          kw:kw + stride * (OW - 1) + 1:stride, :])
    xcol = jnp.stack(cols, axis=3)                 # (N, OH, OW, KH*KW, Cin)
    xcol = xcol.reshape(M, Kc).T                   # (Kc, M) — lane dim = M

    # --- weights flattened to (Cout, KH*KW*Cin) with matching ordering ------
    w_mat = jnp.transpose(weight_oihw, (0, 2, 3, 1)).reshape(Cout, Kc)
    w_mat = w_mat.astype(jnp.float32)
    g = gamma.reshape(Cout, 1).astype(jnp.float32)
    b = beta.reshape(Cout, 1).astype(jnp.float32)

    kernel = _make_kernel(M, eps, negative_slope, relu)
    vmem = pl.BlockSpec(memory_space=pltpu.MemorySpace.VMEM)
    out_t = pl.pallas_call(
        kernel,
        out_shape=jax.ShapeDtypeStruct((Cout, M), jnp.float32),  # lane-dense
        in_specs=[vmem, vmem, vmem, vmem],
        out_specs=vmem,
    )(w_mat, xcol, g, b)

    # (Cout, N*OH*OW) -> (N, Cout, OH, OW): one cheap reshape + transpose.
    return jnp.transpose(out_t.reshape(Cout, N, OH, OW), (1, 0, 2, 3))


# ----------------------------------------------------------------------------
# Pure-JAX reference (mirrors the PyTorch module in training mode).
# ----------------------------------------------------------------------------
def _reference(x, w, gamma, beta, eps=1e-5, slope=0.1):
    conv = jax.lax.conv_general_dilated(
        x, w, window_strides=(1, 1), padding=[(1, 1), (1, 1)],
        dimension_numbers=("NCHW", "OIHW", "NCHW"))
    mean = conv.mean(axis=(0, 2, 3), keepdims=True)
    var = ((conv - mean) ** 2).mean(axis=(0, 2, 3), keepdims=True)
    y = (conv - mean) * jax.lax.rsqrt(var + eps)
    y = y * gamma.reshape(1, -1, 1, 1) + beta.reshape(1, -1, 1, 1)
    return jnp.where(y >= 0, y, slope * y)


if __name__ == "__main__":
    key = jax.random.PRNGKey(0)
    k1, k2, k3, k4 = jax.random.split(key, 4)

    # Module config: in_channels=4, out_channels=8, kernel_size=3,
    # stride=1, relu=True, same_padding=True.
    N, Cin, H, W = 2, 4, 16, 16
    Cout, K = 8, 3

    x = jax.random.normal(k1, (N, Cin, H, W), dtype=jnp.float32)
    weight = 0.1 * jax.random.normal(k2, (Cout, Cin, K, K), dtype=jnp.float32)
    gamma = 1.0 + 0.1 * jax.random.normal(k3, (Cout,), dtype=jnp.float32)
    beta = 0.1 * jax.random.normal(k4, (Cout,), dtype=jnp.float32)

    out = conv2d_norm_noli(x, weight, gamma, beta,
                           stride=1, same_padding=True, relu=True)
    out = jax.block_until_ready(out)

    ref = _reference(x, weight, gamma, beta)
    assert out.shape == (N, Cout, H, W)
    assert np.allclose(np.asarray(out), np.asarray(ref), atol=1e-4, rtol=1e-4)
    print("KERNEL_OK")
</pallas_src>

<mosaic_0001>
module attributes {stable_mosaic.version = 11 : i64} {
  func.func @kernel(%arg0: memref<8x36xf32, #tpu.memory_space<vmem>>, %arg1: memref<36x512xf32, #tpu.memory_space<vmem>>, %arg2: memref<8x1xf32, #tpu.memory_space<vmem>>, %arg3: memref<8x1xf32, #tpu.memory_space<vmem>>, %arg4: memref<8x512xf32, #tpu.memory_space<vmem>>) attributes {dimension_semantics = [], scalar_prefetch = 0 : i64, scratch_operands = 0 : i64, tpu.core_type = #tpu.core_type<tc>} {
    %c0 = arith.constant 0 : index
    %c0_0 = arith.constant 0 : index
    %0 = vector.load %arg0[%c0, %c0_0] : memref<8x36xf32, #tpu.memory_space<vmem>>, vector<8x36xf32>
    %c0_1 = arith.constant 0 : index
    %c0_2 = arith.constant 0 : index
    %1 = vector.load %arg1[%c0_1, %c0_2] : memref<36x512xf32, #tpu.memory_space<vmem>>, vector<36x512xf32>
    %cst = arith.constant dense<0.000000e+00> : vector<8x512xf32>
    %2 = tpu.matmul %0, %1, %cst {dimension_numbers = #tpu.dot_dimension_numbers<[1], [0], [0], [1], [0, 0, 1, 1], [], []>} : vector<8x36xf32>, vector<36x512xf32>, vector<8x512xf32> -> vector<8x512xf32>
    %cst_3 = arith.constant dense<0.000000e+00> : vector<8xf32>
    %3 = vector.multi_reduction <add>, %2, %cst_3 [1] : vector<8x512xf32> to vector<8xf32>
    %4 = vector.shape_cast %3 : vector<8xf32> to vector<8x1xf32>
    %5 = arith.mulf %2, %2 : vector<8x512xf32>
    %cst_4 = arith.constant dense<0.000000e+00> : vector<8xf32>
    %6 = vector.multi_reduction <add>, %5, %cst_4 [1] : vector<8x512xf32> to vector<8xf32>
    %7 = vector.shape_cast %6 : vector<8xf32> to vector<8x1xf32>
    %cst_5 = arith.constant 0.001953125 : f32
    %8 = vector.broadcast %cst_5 : f32 to vector<8x1xf32>
    %9 = arith.mulf %4, %8 : vector<8x1xf32>
    %cst_6 = arith.constant 0.001953125 : f32
    %10 = vector.broadcast %cst_6 : f32 to vector<8x1xf32>
    %11 = arith.mulf %7, %10 : vector<8x1xf32>
    %12 = arith.mulf %9, %9 : vector<8x1xf32>
    %13 = arith.subf %11, %12 : vector<8x1xf32>
    %cst_7 = arith.constant 9.99999974E-6 : f32
    %14 = vector.broadcast %cst_7 : f32 to vector<8x1xf32>
    %15 = arith.addf %13, %14 : vector<8x1xf32>
    %16 = math.rsqrt %15 : vector<8x1xf32>
    %c0_8 = arith.constant 0 : index
    %c0_9 = arith.constant 0 : index
    %17 = vector.load %arg2[%c0_8, %c0_9] : memref<8x1xf32, #tpu.memory_space<vmem>>, vector<8x1xf32>
    %18 = arith.mulf %17, %16 : vector<8x1xf32>
    %c0_10 = arith.constant 0 : index
    %c0_11 = arith.constant 0 : index
    %19 = vector.load %arg3[%c0_10, %c0_11] : memref<8x1xf32, #tpu.memory_space<vmem>>, vector<8x1xf32>
    %20 = arith.mulf %9, %18 : vector<8x1xf32>
    %21 = arith.subf %19, %20 : vector<8x1xf32>
    %22 = vector.broadcast %18 : vector<8x1xf32> to vector<8x512xf32>
    %23 = arith.mulf %2, %22 : vector<8x512xf32>
    %24 = vector.broadcast %21 : vector<8x1xf32> to vector<8x512xf32>
    %25 = arith.addf %23, %24 : vector<8x512xf32>
    %cst_12 = arith.constant 0.000000e+00 : f32
    %26 = vector.broadcast %cst_12 : f32 to vector<8x512xf32>
    %27 = arith.cmpf oge, %25, %26 : vector<8x512xf32>
    %cst_13 = arith.constant 1.000000e-01 : f32
    %28 = vector.broadcast %cst_13 : f32 to vector<8x512xf32>
    %29 = arith.mulf %28, %25 : vector<8x512xf32>
    %30 = arith.select %27, %25, %29 : vector<8x512xi1>, vector<8x512xf32>
    %c0_14 = arith.constant 0 : index
    %c0_15 = arith.constant 0 : index
    %31 = vector.load %arg4[%c0_14, %c0_15] : memref<8x512xf32, #tpu.memory_space<vmem>>, vector<8x512xf32>
    tpu.vector_store %arg4[%c0_14, %c0_15], %30 {strides = array<i32>} : memref<8x512xf32, #tpu.memory_space<vmem>>, vector<8x512xf32>,
    return
  }
}

</mosaic_0001>

<llo_original>
// kernel: tpu_custom_call.1
$region0: #{tpu_custom_call.1}
  #allocation0 [shape = 'u32[]', space=smem, size = 0x4, offset = 0x4, fixed_abs, tag = 'smem constant byte address 0x4 - core index']
  #allocation1 [shape = 'u32[144,128]{1,0:T(1,128)}', space=vmem, size = 0x12000, scoped, tag = 'internal scratch']
  %s0 = inlined_call_operand.vmem [shape: f32[8,36], index: 0, kind: input, shape index: {}]
  %s1 = inlined_call_operand.hbm [shape: f32[36,512], index: 1, kind: input, shape index: {}]
  %s2 = inlined_call_operand.vmem [shape: f32[8,1], index: 2, kind: input, shape index: {}]
  %s3 = inlined_call_operand.vmem [shape: f32[8,1], index: 3, kind: input, shape index: {}]
  %s4 = inlined_call_operand.hbm [shape: f32[8,512], index: 4, kind: output, shape index: {}]
  %s5 = sld [smem:[#allocation0]]
  $region30: #{tpu_custom_call.1} parent=0
    _
  %s7 = ssub.s32 1, %s5
  %s8 = scalar_select 0, %s7, %s5
  $region1: #{tpu_custom_call.1} parent=0
    #allocation2 [shape = 'u8[81920]{0}', space=vmem, size = 0x14000, scoped, tag = 'input window, operand 1, single buffered']
    #allocation3 [shape = 's32[1]{0}', space=sflag, size = 0x4, scoped, tag = 'scoped memory for tpu_custom_call.1']
    #allocation4 [shape = 's32[1]{0}', space=sflag, size = 0x4, scoped, tag = 'scoped memory for tpu_custom_call.1']
    #allocation5 [shape = 'u8[16384]{0}', space=vmem, size = 0x4000, scoped, tag = 'output window, operand 0, single buffered']
    %9 = vsyncpa [#allocation3], 0
    %10 = vsyncpa [#allocation4], 0
    // Predicated region
    $region2: #{tpu_custom_call.1} parent=1 // pred_check
      _
    $region3: #{tpu_custom_call.1} parent=1 // pred_check_branch
      %12 = sbr.rel (0) target = $region5
    $region4: #{tpu_custom_call.1} parent=1 // pred_region
      _
    $region5: #{tpu_custom_call.1} parent=1 // pred_fallthru
      _
    // Predicated region
    $region6: #{tpu_custom_call.1} parent=1 // pred_check
      _
    $region7: #{tpu_custom_call.1} parent=1 // pred_check_branch
      %14 = sbr.rel (0) target = $region9
    $region8: #{tpu_custom_call.1} parent=1 // pred_region
      %s16 = ssub.s32 2560, 2560
      %17 = vsyncadd [#allocation3], %s16
      %s18 = sshll.u32 [#allocation2], 4
      %s19 = int_to_ptr.vmem [resolvable:$true] %s18
      %24 = dma.hbm_to_vmem [thread:$0]  %s1, 2560, %s19, [#allocation3], 512, 512, 32
    $region9: #{tpu_custom_call.1} parent=1 // pred_fallthru
      _
    // Predicated region
    $region10: #{tpu_custom_call.1} parent=1 // pred_check
      _
    $region11: #{tpu_custom_call.1} parent=1 // pred_check_branch
      %26 = sbr.rel (0) target = $region13
    $region12: #{tpu_custom_call.1} parent=1 // pred_region
      _
    $region13: #{tpu_custom_call.1} parent=1 // pred_fallthru
      _
    // Predicated region
    $region14: #{tpu_custom_call.1} parent=1 // pred_check
      _
    $region15: #{tpu_custom_call.1} parent=1 // pred_check_branch
      %28 = sbr.rel (0) target = $region17
    $region16: #{tpu_custom_call.1} parent=1 // pred_region
      _
    $region17: #{tpu_custom_call.1} parent=1 // pred_fallthru
      _
    // Predicated region
    $region18: #{tpu_custom_call.1} parent=1 // pred_check
      _
    $region19: #{tpu_custom_call.1} parent=1 // pred_check_branch
      %30 = sbr.rel (0) target = $region21
    $region20: #{tpu_custom_call.1} parent=1 // pred_region
      %31 = dma.done [#allocation3], 2560
    $region21: #{tpu_custom_call.1} parent=1 // pred_fallthru
      _
    %v32 = vld [vmem:[%s0] sm:$0xff]
    %v33 = vld [vmem:[#allocation2] sm:$0xff]
    %v34 = vld [vmem:[#allocation2 + $0x8] sm:$0xff]
    %v35 = vld [vmem:[#allocation2 + $0x10] sm:$0xff]
    %v36 = vld [vmem:[#allocation2 + $0x18] sm:$0xff]
    %v37 = vld [vmem:[#allocation2 + $0x20] sm:$0xff]
    %v38 = vld [vmem:[#allocation2 + $0x28] sm:$0xff]
    %v39 = vld [vmem:[#allocation2 + $0x30] sm:$0xff]
    %v40 = vld [vmem:[#allocation2 + $0x38] sm:$0xff]
    %v41 = vld [vmem:[#allocation2 + $0x40] sm:$0xff]
    %v42 = vld [vmem:[#allocation2 + $0x48] sm:$0xff]
    %v43 = vld [vmem:[#allocation2 + $0x50] sm:$0xff]
    %v44 = vld [vmem:[#allocation2 + $0x58] sm:$0xff]
    %v45 = vld [vmem:[#allocation2 + $0x60] sm:$0xff]
    %v46 = vld [vmem:[#allocation2 + $0x68] sm:$0xff]
    %v47 = vld [vmem:[#allocation2 + $0x70] sm:$0xff]
    %v48 = vld [vmem:[#allocation2 + $0x78] sm:$0xff]
    %v49 = vld [vmem:[#allocation2 + $0x80] sm:$0xf]
    %v50 = vld [vmem:[#allocation2 + $0x88] sm:$0xf]
    %v51 = vld [vmem:[#allocation2 + $0x90] sm:$0xf]
    %v52 = vld [vmem:[#allocation2 + $0x98] sm:$0xf]
    %vm53 = vcmask 293888
    %v55 = vsel %vm53, %v32, 0
    %vm57 = vcmask 1043456
    %v59 = vsel %vm57, %v49, 0
    %v62 = vsel %vm57, %v50, 0
    %v65 = vsel %vm57, %v51, 0
    %v68 = vsel %vm57, %v52, 0
    %70 = vmatprep.subr.mxu0 %v34
    %71 = vmatpush1.msra.mxu0 %v33
    %72 = vmatprep.subr.mxu0 %v38
    %73 = vmatpush1.msra.mxu0 %v37
    %74 = vmatprep.subr.mxu0 %v42
    %75 = vmatpush1.msra.mxu0 %v41
    %76 = vmatprep.subr.mxu0 %v46
    %77 = vmatpush1.msra.mxu0 %v45
    %78 = vmatprep.subr.mxu0 %v62
    %79 = vmatpush1.msra.mxu0 %v59
    %80 = vmatprep.subr.mxu0 0.0
    %81 = vmatpush1.msra.mxu0 0.0
    %82 = vmatprep.subr.mxu0 0.0
    %83 = vmatpush1.msra.mxu0 0.0
    %84 = vmatprep.subr.mxu0 0.0
    %85 = vmatpush1.msra.mxu0 0.0
    %86 = vmatprep.subr.mxu0 0.0
    %87 = vmatpush1.msra.mxu0 0.0
    %88 = vmatprep.subr.mxu0 0.0
    %89 = vmatpush1.msra.mxu0 0.0
    %90 = vmatprep.subr.mxu0 0.0
    %91 = vmatpush1.msra.mxu0 0.0
    %92 = vmatprep.subr.mxu0 0.0
    %93 = vmatpush1.msra.mxu0 0.0
    %94 = vmatprep.subr.mxu0 0.0
    %95 = vmatpush1.msra.mxu0 0.0
    %96 = vmatprep.subr.mxu0 0.0
    %97 = vmatpush1.msra.mxu0 0.0
    %98 = vmatprep.subr.mxu0 0.0
    %99 = vmatpush1.msra.mxu0 0.0
    %100 = vmatprep.subr.mxu0 0.0
    %101 = vmatpush1.msra.mxu0 0.0
    %102 = vmatprep.subr.mxu0 0.0
    %103 = vmatpush1.msra.mxu0 0.0
    %104 = vmatprep.subr.mxu0 0.0
    %105 = vmatpush1.msra.mxu0 0.0
    %106 = vmatprep.subr.mxu0 0.0
    %107 = vmatpush1.msra.mxu0 0.0
    %108 = vmatprep.subr.mxu0 0.0
    %109 = vmatpush1.msra.mxu0 0.0
    %110 = vmatprep.subr.mxu0 0.0
    %111 = vmatpush1.msra.mxu0 0.0
    %112 = vmatprep.subr.mxu0 0.0
    %113 = vmatpush1.msra.mxu0 0.0
    %114 = vmatprep.subr.mxu0 0.0
    %115 = vmatpush1.msra.mxu0 0.0
    %116 = vmatprep.subr.mxu0 0.0
    %117 = vmatpush1.msra.mxu0 0.0
    %118 = vmatprep.subr.mxu0 0.0
    %119 = vmatpush1.msra.mxu0 0.0
    %120 = vmatprep.subr.mxu0 0.0
    %121 = vmatpush1.msra.mxu0 0.0
    %122 = vmatprep.subr.mxu0 0.0
    %123 = vmatpush1.msra.mxu0 0.0
    %124 = vmatprep.subr.mxu0 0.0
    %125 = vmatpush1.msra.mxu0 0.0
    %126 = vmatprep.subr.mxu0 0.0
    %127 = vmatpush1.msra.mxu0 0.0
    %128 = vmatprep.subr.mxu0 0.0
    %129 = vmatpush1.msra.mxu0 0.0
    %130 = vmatprep.subr.mxu0 0.0
    %131 = vmatpush1.msra.mxu0 0.0
    %132 = vmatprep.subr.mxu0 0.0
    %133 = vmatpush1.msra.mxu0 0.0
    %134 = vmatprep.mubr.f32.mxu0 0.0
    %135 = vmatmul.mubr.f32.gmra.mrb[0].mxu0 %v55
    %v136 = vpop.f32.mrb[0].mxu0
    %v137 = vadd.f32 0.0, %v136
    %v138 = vpop.f32.mrb[0].mxu0
    %v139 = vadd.f32 0.0, %v138
    %140 = vdwg.mxu0
    %141 = vmatprep.subr.mxu0 %v36
    %142 = vmatpush1.msra.mxu0 %v35
    %143 = vmatprep.subr.mxu0 %v40
    %144 = vmatpush1.msra.mxu0 %v39
    %145 = vmatprep.subr.mxu0 %v44
    %146 = vmatpush1.msra.mxu0 %v43
    %147 = vmatprep.subr.mxu0 %v48
    %148 = vmatpush1.msra.mxu0 %v47
    %149 = vmatprep.subr.mxu0 %v68
    %150 = vmatpush1.msra.mxu0 %v65
    %151 = vmatprep.subr.mxu0 0.0
    %152 = vmatpush1.msra.mxu0 0.0
    %153 = vmatprep.subr.mxu0 0.0
    %154 = vmatpush1.msra.mxu0 0.0
    %155 = vmatprep.subr.mxu0 0.0
    %156 = vmatpush1.msra.mxu0 0.0
    %157 = vmatprep.subr.mxu0 0.0
    %158 = vmatpush1.msra.mxu0 0.0
    %159 = vmatprep.subr.mxu0 0.0
    %160 = vmatpush1.msra.mxu0 0.0
    %161 = vmatprep.subr.mxu0 0.0
    %162 = vmatpush1.msra.mxu0 0.0
    %163 = vmatprep.subr.mxu0 0.0
    %164 = vmatpush1.msra.mxu0 0.0
    %165 = vmatprep.subr.mxu0 0.0
    %166 = vmatpush1.msra.mxu0 0.0
    %167 = vmatprep.subr.mxu0 0.0
    %168 = vmatpush1.msra.mxu0 0.0
    %169 = vmatprep.subr.mxu0 0.0
    %170 = vmatpush1.msra.mxu0 0.0
    %171 = vmatprep.subr.mxu0 0.0
    %172 = vmatpush1.msra.mxu0 0.0
    %173 = vmatprep.subr.mxu0 0.0
    %174 = vmatpush1.msra.mxu0 0.0
    %175 = vmatprep.subr.mxu0 0.0
    %176 = vmatpush1.msra.mxu0 0.0
    %177 = vmatprep.subr.mxu0 0.0
    %178 = vmatpush1.msra.mxu0 0.0
    %179 = vmatprep.subr.mxu0 0.0
    %180 = vmatpush1.msra.mxu0 0.0
    %181 = vmatprep.subr.mxu0 0.0
    %182 = vmatpush1.msra.mxu0 0.0
    %183 = vmatprep.subr.mxu0 0.0
    %184 = vmatpush1.msra.mxu0 0.0
    %185 = vmatprep.subr.mxu0 0.0
    %186 = vmatpush1.msra.mxu0 0.0
    %187 = vmatprep.subr.mxu0 0.0
    %188 = vmatpush1.msra.mxu0 0.0
    %189 = vmatprep.subr.mxu0 0.0
    %190 = vmatpush1.msra.mxu0 0.0
    %191 = vmatprep.subr.mxu0 0.0
    %192 = vmatpush1.msra.mxu0 0.0
    %193 = vmatprep.subr.mxu0 0.0
    %194 = vmatpush1.msra.mxu0 0.0
    %195 = vmatprep.subr.mxu0 0.0
    %196 = vmatpush1.msra.mxu0 0.0
    %197 = vmatprep.subr.mxu0 0.0
    %198 = vmatpush1.msra.mxu0 0.0
    %199 = vmatprep.subr.mxu0 0.0
    %200 = vmatpush1.msra.mxu0 0.0
    %201 = vmatprep.subr.mxu0 0.0
    %202 = vmatpush1.msra.mxu0 0.0
    %203 = vmatprep.subr.mxu0 0.0
    %204 = vmatpush1.msra.mxu0 0.0
    %205 = vmatprep.mubr.f32.mxu0 0.0
    %206 = vmatmul.mubr.f32.gmra.mrb[0].mxu0 %v55
    %v207 = vpop.f32.mrb[0].mxu0
    %v208 = vadd.f32 0.0, %v207
    %v209 = vpop.f32.mrb[0].mxu0
    %v210 = vadd.f32 0.0, %v209
    %211 = vdwg.mxu0
    %v212 = vadd.f32 %v137, %v139
    %v213 = vadd.f32 %v212, %v208
    %v214 = vadd.f32 %v213, %v210
    %215 = vadd.xlane.f32.xlu0 %v214
    %v216 = vpop.xlane.xlu0 %215
    %v217 = vmul.f32 %v137, %v137
    %v218 = vmul.f32 %v139, %v139
    %v219 = vmul.f32 %v208, %v208
    %v220 = vmul.f32 %v210, %v210
    %v221 = vadd.f32 %v217, %v218
    %v222 = vadd.f32 %v221, %v219
    %v223 = vadd.f32 %v222, %v220
    %224 = vadd.xlane.f32.xlu0 %v223
    %v225 = vpop.xlane.xlu0 %224
    %v226 = vmul.f32 %v216, 0.001953125
    %v227 = vmul.f32 %v225, 0.001953125
    %v228 = vmul.f32 %v226, %v226
    %v229 = vsub.f32 %v227, %v228
    %v230 = vadd.f32 %v229, 1e-05
    %v231 = vrsqrt.pop %v230
    %v232 = vld [vmem:[%s2] sm:$0xff]
    %v233 = vmul.f32 %v232, %v231
    %v234 = vld [vmem:[%s3] sm:$0xff]
    %v235 = vmul.f32 %v226, %v233
    %v236 = vsub.f32 %v234, %v235
    %238 = vset.pattern.permute.xlu0 0
    %239 = vperm.xlu0 %238, %v233
    %v240 = vpop.permute.xlu0 %239
    %v242 = vmul.f32 %v137, %v240
    %v243 = vmul.f32 %v139, %v240
    %v244 = vmul.f32 %v208, %v240
    %v245 = vmul.f32 %v210, %v240
    %247 = vset.pattern.permute.xlu0 0
    %248 = vperm.xlu0 %247, %v236
    %v249 = vpop.permute.xlu0 %248
    %v251 = vadd.f32 %v242, %v249
    %v252 = vadd.f32 %v243, %v249
    %v253 = vadd.f32 %v244, %v249
    %v254 = vadd.f32 %v245, %v249
    %vm255 = vcmp.ge.f32.partialorder %v251, 0.0
    %vm256 = vcmp.ge.f32.partialorder %v252, 0.0
    %vm257 = vcmp.ge.f32.partialorder %v253, 0.0
    %vm258 = vcmp.ge.f32.partialorder %v254, 0.0
    %v259 = vmul.f32 %v251, 0.1
    %v260 = vmul.f32 %v252, 0.1
    %v261 = vmul.f32 %v253, 0.1
    %v262 = vmul.f32 %v254, 0.1
    %v263 = vsel %vm255, %v251, %v259
    %v264 = vsel %vm256, %v252, %v260
    %v265 = vsel %vm257, %v253, %v261
    %v266 = vsel %vm258, %v254, %v262
    %267 = vst [vmem:[#allocation5] sm:$0xff] %v263
    %268 = vst [vmem:[#allocation5 + $0x8] sm:$0xff] %v264
    %269 = vst [vmem:[#allocation5 + $0x10] sm:$0xff] %v265
    %270 = vst [vmem:[#allocation5 + $0x18] sm:$0xff] %v266
    // Predicated region
    $region22: #{tpu_custom_call.1} parent=1 // pred_check
      _
    $region23: #{tpu_custom_call.1} parent=1 // pred_check_branch
      %272 = sbr.rel (0) target = $region25
    $region24: #{tpu_custom_call.1} parent=1 // pred_region
      %s274 = ssub.s32 512, 512
      %275 = vsyncadd [#allocation4], %s274
      %s277 = sshll.u32 [#allocation5], 4
      %s278 = int_to_ptr.vmem [resolvable:$true] %s277
      %280 = dma.vmem_to_hbm [thread:$0]  %s278, 512, %s4, [#allocation4]
    $region25: #{tpu_custom_call.1} parent=1 // pred_fallthru
      _
    // Predicated region
    $region26: #{tpu_custom_call.1} parent=1 // pred_check
      _
    $region27: #{tpu_custom_call.1} parent=1 // pred_check_branch
      %282 = sbr.rel (0) target = $region29
    $region28: #{tpu_custom_call.1} parent=1 // pred_region
      %283 = dma.done [#allocation4], 512
    $region29: #{tpu_custom_call.1} parent=1 // pred_fallthru
      _
    %284 = vsyncpa [#allocation3], 1
    %285 = vsyncpa [#allocation4], 1

</llo_original>
